<compile_context>
chip_gen: v7x
topology: tpu7x:2x2x1
jax: 0.10.0
libtpu: 0.0.40
codegen_flags: <defaults>
</compile_context>

<pallas_src>
import functools

import numpy as np
import jax
import jax.numpy as jnp
from jax.experimental import pallas as pl
from jax.experimental.pallas import tpu as pltpu


_IN_H = 7                                # input spatial size
_OUT_CH = 8                              # conv output channels
_OUT_HW = 3                              # spatial size after stride-2 valid conv
_FEAT = _OUT_CH * _OUT_HW * _OUT_HW      # 72 flattened conv features
_NPIX = _IN_H * _IN_H                    # 49 input pixels
_HID = 16                                # Linear(73, 16) output width


def _round_up(n, m):
    return (n + m - 1) // m * m


def _im2col_matrix():
    """0/1 matrix S of shape (49, 81) with patches_flat = x_flat @ S.

    Column index = p*9 + e, p = oh*3 + ow (output position), e = kh*3 + kw
    (kernel element); stride 2, valid padding.  Built once in numpy."""
    S = np.zeros((_NPIX, 81), dtype=np.float32)
    for oh in range(_OUT_HW):
        for ow in range(_OUT_HW):
            p = oh * _OUT_HW + ow
            for kh in range(3):
                for kw in range(3):
                    pix = (2 * oh + kh) * _IN_H + (2 * ow + kw)
                    S[pix, p * 9 + (kh * 3 + kw)] = 1.0
    return S


def fold_params(conv_w, conv_b, enc_w, enc_b, *, compute_dtype=jnp.float32):
    """Bake conv-as-matmul + torch channel-major flatten; split Linear(73, 16).

    Call ONCE per parameter set; the result is reused by every forward call.
    compute_dtype only affects the two MXU weight operands (bf16 halves their
    VMEM/DMA cost and quantizes activations to ~3 digits); biases and the
    conditioning weight stay f32 (elementwise / K=1 path)."""
    conv_w = jnp.asarray(conv_w, jnp.float32)
    conv_b = jnp.asarray(conv_b, jnp.float32)
    enc_w = jnp.asarray(enc_w, jnp.float32)
    enc_b = jnp.asarray(enc_b, jnp.float32)

    cw_flat = conv_w.reshape(_OUT_CH, 9)                              # (o, e)
    eye9 = jnp.eye(9, dtype=jnp.float32)
    # w_big[p*9 + e, o*9 + p'] = cw_flat[o, e] * (p == p')
    w_big = (eye9[:, None, None, :] *
             cw_flat.T[None, :, :, None]).reshape(81, _FEAT)          # (81, 72)
    w_conv = jnp.asarray(_im2col_matrix()) @ w_big                    # (49, 72)

    wenc_x = enc_w[:, :_FEAT].T                                       # (72, 16)

    # Merged constants: row0 = conv bias (flattened), row1 = Linear weight for
    # the conditioning column, row2 = Linear bias (rows 1/2 zero-padded to 72).
    consts = jnp.zeros((3, _FEAT), jnp.float32)
    consts = consts.at[0, :].set(jnp.repeat(conv_b, _OUT_HW * _OUT_HW))
    consts = consts.at[1, :_HID].set(enc_w[:, _FEAT])
    consts = consts.at[2, :_HID].set(enc_b)

    return (w_conv.astype(compute_dtype), wenc_x.astype(compute_dtype), consts)


def _encoder_kernel(x_ref, c_ref, wconv_ref, wencx_ref, consts_ref, out_ref):
    w_conv = wconv_ref[...]                                  # (49, 72)
    x = x_ref[...].astype(w_conv.dtype)                      # (TB, 49)

    # conv-as-matmul (im2col + flatten baked into the weight), f32 acc + ReLU
    feat = jnp.dot(x, w_conv, preferred_element_type=jnp.float32)
    feat = jnp.maximum(feat + consts_ref[0:1, :], 0.0)       # (TB, 72) f32

    # Linear(73, 16): feature part on the MXU
    w_enc = wencx_ref[...]                                   # (72, 16)
    y = jnp.dot(feat.astype(w_enc.dtype), w_enc,
                preferred_element_type=jnp.float32)          # (TB, 16) f32

    # conditioning column: lane-major (1, TB) block -> (TB, 1) on the XLU,
    # then a VPU broadcast multiply against the (1, 16) conditioning weight.
    c_col = c_ref[...].astype(jnp.float32).T                 # (TB, 1)
    y = y + c_col * consts_ref[1:2, :_HID]

    out_ref[...] = jnp.maximum(y + consts_ref[2:3, :_HID], 0.0).astype(out_ref.dtype)


def _choose_tb(B, block_b):
    """Pick the batch tile.

    - multiple of 128 (lane-dense c block + sublane alignment) unless tb == B
      (full-dimension blocks are always legal),
    - >= 2 grid steps once B is large enough, so the "parallel" batch axis can
      shard across both v7x TensorCores,
    - the last block may be partial (Pallas masks OOB reads / writes), so there
      is no explicit padding and padding waste is bounded by one tile."""
    block_b = max(128, _round_up(block_b, 128))
    if B <= min(512, block_b):
        return B                                   # single exact block
    n_steps = max(2, -(-B // block_b))
    return min(block_b, _round_up(-(-B // n_steps), 128))


@functools.partial(jax.jit, static_argnames=("block_b",))
def cae_conv_encoder_cond(x, c, folded, block_b=8192):
    """x: (B, 1, 7, 7) f32 NCHW, c: (B, 1) f32, folded = fold_params(...).
    Returns (B, 16) f32."""
    w_conv, wenc_x, consts = folded
    B = x.shape[0]

    # Free metadata reshapes of contiguous arrays (no extra HBM pass).
    x2d = x.reshape(B, _NPIX)          # (B, 49) pixel stream
    c_row = c.reshape(1, B)            # (B, 1) row-major == (1, B) lane-dense

    tb = _choose_tb(B, block_b)
    grid = (pl.cdiv(B, tb),)
    const_map = lambda i: (0, 0)

    itemsize = jnp.dtype(w_conv.dtype).itemsize
    cost = pl.CostEstimate(
        flops=int(2 * B * (_NPIX * _FEAT + _FEAT * _HID + _HID)),
        transcendentals=0,
        bytes_accessed=int(B * (_NPIX + 1 + _HID) * 4
                           + (_NPIX * _FEAT + _FEAT * _HID) * itemsize
                           + 3 * _FEAT * 4))

    out = pl.pallas_call(
        _encoder_kernel,
        out_shape=jax.ShapeDtypeStruct((B, _HID), jnp.float32),
        grid=grid,
        in_specs=[
            pl.BlockSpec((tb, _NPIX), lambda i: (i, 0)),    # pixels
            pl.BlockSpec((1, tb), lambda i: (0, i)),        # conditioning, lane-dense
            pl.BlockSpec((_NPIX, _FEAT), const_map),        # folded conv weight
            pl.BlockSpec((_FEAT, _HID), const_map),         # Linear weight (x part)
            pl.BlockSpec((3, _FEAT), const_map),            # biases + c weight
        ],
        out_specs=pl.BlockSpec((tb, _HID), lambda i: (i, 0)),
        compiler_params=pltpu.CompilerParams(
            dimension_semantics=("parallel",)),             # shards across v7x TCs
        cost_estimate=cost,
    )(x2d, c_row, w_conv, wenc_x, consts)
    return out


def _reference(x, c, conv_w, conv_b, enc_w, enc_b):
    """Pure-JAX reference matching the PyTorch forward."""
    y = jax.lax.conv_general_dilated(
        x, conv_w, window_strides=(2, 2), padding="VALID",
        dimension_numbers=("NCHW", "OIHW", "NCHW"))
    y = jax.nn.relu(y + conv_b.reshape(1, -1, 1, 1))
    y = y.reshape(x.shape[0], -1)                 # torch.flatten(start_dim=1)
    y = jnp.concatenate([y, c], axis=1)           # torch.hstack
    y = jax.nn.relu(y @ enc_w.T + enc_b)          # Linear(73, 16) + ReLU
    return y


if __name__ == "__main__":
    key = jax.random.PRNGKey(0)
    k_x, k_c, k_cw, k_cb, k_ew, k_eb, k_x2, k_c2 = jax.random.split(key, 8)

    B = 2
    x = jax.random.normal(k_x, (B, 1, 7, 7), dtype=jnp.float32)
    c = jax.random.normal(k_c, (B, 1), dtype=jnp.float32)

    # Deterministic synthetic parameters (shapes from the module __init__).
    conv_w = 0.3 * jax.random.normal(k_cw, (8, 1, 3, 3), dtype=jnp.float32)
    conv_b = 0.1 * jax.random.normal(k_cb, (8,), dtype=jnp.float32)
    enc_w = 0.1 * jax.random.normal(k_ew, (16, 73), dtype=jnp.float32)  # (out, in)
    enc_b = 0.1 * jax.random.normal(k_eb, (16,), dtype=jnp.float32)

    ref = jax.block_until_ready(_reference(x, c, conv_w, conv_b, enc_w, enc_b))

    # f32 path: exact vs reference (single full-dimension block).
    folded = fold_params(conv_w, conv_b, enc_w, enc_b)
    out = jax.block_until_ready(cae_conv_encoder_cond(x, c, folded))
    assert out.shape == (B, 16), out.shape
    assert jnp.allclose(out, ref, atol=1e-5, rtol=1e-5), (
        f"max abs diff = {jnp.max(jnp.abs(out - ref))}")

    # Multi-step grid with a partial (masked) last block: 300 rows, 128-row tiles.
    B2 = 300
    x2 = jax.random.normal(k_x2, (B2, 1, 7, 7), dtype=jnp.float32)
    c2 = jax.random.normal(k_c2, (B2, 1), dtype=jnp.float32)
    ref2 = _reference(x2, c2, conv_w, conv_b, enc_w, enc_b)
    out2 = jax.block_until_ready(cae_conv_encoder_cond(x2, c2, folded, block_b=128))
    assert out2.shape == (B2, 16), out2.shape
    assert jnp.allclose(out2, ref2, atol=1e-5, rtol=1e-5), (
        f"max abs diff (tiled) = {jnp.max(jnp.abs(out2 - ref2))}")

    # Optional bf16 MXU-operand path: weights quantized, activations cast
    # in-kernel only (no extra HBM pass), f32 accumulation and f32 output.
    folded_bf16 = fold_params(conv_w, conv_b, enc_w, enc_b,
                              compute_dtype=jnp.bfloat16)
    out_bf16 = jax.block_until_ready(cae_conv_encoder_cond(x, c, folded_bf16))
    assert jnp.allclose(out_bf16, ref, atol=1e-1, rtol=5e-2), (
        f"bf16 max abs diff = {jnp.max(jnp.abs(out_bf16 - ref))}")

    print("KERNEL_OK")
</pallas_src>

<mosaic_0001>
module attributes {stable_mosaic.version = 11 : i64} {
  func.func @_encoder_kernel(%arg0: i32, %arg1: memref<2x49xf32, #tpu.memory_space<vmem>>, %arg2: memref<1x2xf32, #tpu.memory_space<vmem>>, %arg3: memref<49x72xf32, #tpu.memory_space<vmem>>, %arg4: memref<72x16xf32, #tpu.memory_space<vmem>>, %arg5: memref<3x72xf32, #tpu.memory_space<vmem>>, %arg6: memref<2x16xf32, #tpu.memory_space<vmem>>) attributes {dimension_semantics = [#tpu.dimension_semantics<parallel>], iteration_bounds = array<i64: 1>, scalar_prefetch = 0 : i64, scratch_operands = 0 : i64, tpu.core_type = #tpu.core_type<tc>, window_params = [{transform_indices = @transform_0, window_bounds = array<i64: 2, 49>}, {transform_indices = @transform_1, window_bounds = array<i64: 1, 2>}, {pipeline_mode = #tpu.pipeline_mode<synchronous>, transform_indices = @transform_2, window_bounds = array<i64: 49, 72>}, {pipeline_mode = #tpu.pipeline_mode<synchronous>, transform_indices = @transform_3, window_bounds = array<i64: 72, 16>}, {pipeline_mode = #tpu.pipeline_mode<synchronous>, transform_indices = @transform_4, window_bounds = array<i64: 3, 72>}, {transform_indices = @transform_5, window_bounds = array<i64: 2, 16>}]} {
    %c0 = arith.constant 0 : index
    %c0_0 = arith.constant 0 : index
    %0 = vector.load %arg3[%c0, %c0_0] : memref<49x72xf32, #tpu.memory_space<vmem>>, vector<49x72xf32>
    %c0_1 = arith.constant 0 : index
    %c0_2 = arith.constant 0 : index
    %1 = vector.load %arg1[%c0_1, %c0_2] : memref<2x49xf32, #tpu.memory_space<vmem>>, vector<2x49xf32>
    %cst = arith.constant dense<0.000000e+00> : vector<2x72xf32>
    %2 = tpu.matmul %1, %0, %cst {dimension_numbers = #tpu.dot_dimension_numbers<[1], [0], [0], [1], [0, 0, 1, 1], [], []>} : vector<2x49xf32>, vector<49x72xf32>, vector<2x72xf32> -> vector<2x72xf32>
    %c0_3 = arith.constant 0 : index
    %c0_4 = arith.constant 0 : index
    %3 = vector.load %arg5[%c0_3, %c0_4] : memref<3x72xf32, #tpu.memory_space<vmem>>, vector<1x72xf32>
    %4 = vector.broadcast %3 : vector<1x72xf32> to vector<2x72xf32>
    %5 = arith.addf %2, %4 : vector<2x72xf32>
    %cst_5 = arith.constant 0.000000e+00 : f32
    %6 = vector.broadcast %cst_5 : f32 to vector<2x72xf32>
    %7 = arith.maximumf %5, %6 : vector<2x72xf32>
    %c0_6 = arith.constant 0 : index
    %c0_7 = arith.constant 0 : index
    %8 = vector.load %arg4[%c0_6, %c0_7] : memref<72x16xf32, #tpu.memory_space<vmem>>, vector<72x16xf32>
    %cst_8 = arith.constant dense<0.000000e+00> : vector<2x16xf32>
    %9 = tpu.matmul %7, %8, %cst_8 {dimension_numbers = #tpu.dot_dimension_numbers<[1], [0], [0], [1], [0, 0, 1, 1], [], []>} : vector<2x72xf32>, vector<72x16xf32>, vector<2x16xf32> -> vector<2x16xf32>
    %c0_9 = arith.constant 0 : index
    %c0_10 = arith.constant 0 : index
    %10 = vector.load %arg2[%c0_9, %c0_10] : memref<1x2xf32, #tpu.memory_space<vmem>>, vector<1x2xf32>
    %11 = tpu.transpose %10, [1, 0] : vector<1x2xf32> -> vector<2x1xf32>
    %c1 = arith.constant 1 : index
    %c0_11 = arith.constant 0 : index
    %12 = vector.load %arg5[%c1, %c0_11] : memref<3x72xf32, #tpu.memory_space<vmem>>, vector<1x16xf32>
    %13 = vector.broadcast %11 : vector<2x1xf32> to vector<2x16xf32>
    %14 = vector.broadcast %12 : vector<1x16xf32> to vector<2x16xf32>
    %15 = arith.mulf %13, %14 : vector<2x16xf32>
    %16 = arith.addf %9, %15 : vector<2x16xf32>
    %c2 = arith.constant 2 : index
    %c0_12 = arith.constant 0 : index
    %17 = vector.load %arg5[%c2, %c0_12] : memref<3x72xf32, #tpu.memory_space<vmem>>, vector<1x16xf32>
    %18 = vector.broadcast %17 : vector<1x16xf32> to vector<2x16xf32>
    %19 = arith.addf %16, %18 : vector<2x16xf32>
    %cst_13 = arith.constant 0.000000e+00 : f32
    %20 = vector.broadcast %cst_13 : f32 to vector<2x16xf32>
    %21 = arith.maximumf %19, %20 : vector<2x16xf32>
    %c0_14 = arith.constant 0 : index
    %c0_15 = arith.constant 0 : index
    %22 = vector.load %arg6[%c0_14, %c0_15] : memref<2x16xf32, #tpu.memory_space<vmem>>, vector<2x16xf32>
    tpu.vector_store %arg6[%c0_14, %c0_15], %21 {strides = array<i32>} : memref<2x16xf32, #tpu.memory_space<vmem>>, vector<2x16xf32>,
    return
  }
  func.func @transform_0(%arg0: i32) -> (i32, i32) {
    %c0_i32 = arith.constant 0 : i32
    %c0_i32_0 = arith.constant 0 : i32
    return %arg0, %c0_i32 : i32, i32
  }
  func.func @transform_1(%arg0: i32) -> (i32, i32) {
    %c0_i32 = arith.constant 0 : i32
    %c0_i32_0 = arith.constant 0 : i32
    return %c0_i32, %arg0 : i32, i32
  }
  func.func @transform_2(%arg0: i32) -> (i32, i32) {
    %c0_i32 = arith.constant 0 : i32
    %c0_i32_0 = arith.constant 0 : i32
    %c0_i32_1 = arith.constant 0 : i32
    return %c0_i32, %c0_i32_0 : i32, i32
  }
  func.func @transform_3(%arg0: i32) -> (i32, i32) {
    %c0_i32 = arith.constant 0 : i32
    %c0_i32_0 = arith.constant 0 : i32
    %c0_i32_1 = arith.constant 0 : i32
    return %c0_i32, %c0_i32_0 : i32, i32
  }
  func.func @transform_4(%arg0: i32) -> (i32, i32) {
    %c0_i32 = arith.constant 0 : i32
    %c0_i32_0 = arith.constant 0 : i32
    %c0_i32_1 = arith.constant 0 : i32
    return %c0_i32, %c0_i32_0 : i32, i32
  }
  func.func @transform_5(%arg0: i32) -> (i32, i32) {
    %c0_i32 = arith.constant 0 : i32
    %c0_i32_0 = arith.constant 0 : i32
    return %arg0, %c0_i32 : i32, i32
  }
}

</mosaic_0001>

<llo_original>
// kernel: cae_conv_encoder_cond.1
$region0: #{cae_conv_encoder_cond.1}
  #allocation0 [shape = 'u32[]', space=smem, size = 0x4, offset = 0x4, fixed_abs, tag = 'smem constant byte address 0x4 - core index']
  #allocation1 [shape = 'u32[144,128]{1,0:T(1,128)}', space=vmem, size = 0x12000, scoped, tag = 'internal scratch']
  %s0 = inlined_call_operand.vmem [shape: f32[2,49], index: 0, kind: input, shape index: {}]
  %s1 = inlined_call_operand.vmem [shape: f32[1,2], index: 1, kind: input, shape index: {}]
  %s2 = inlined_call_operand.vmem [shape: f32[49,72], index: 2, kind: input, shape index: {}]
  %s3 = inlined_call_operand.vmem [shape: f32[72,16], index: 3, kind: input, shape index: {}]
  %s4 = inlined_call_operand.vmem [shape: f32[3,72], index: 4, kind: input, shape index: {}]
  %s5 = inlined_call_operand.hbm [shape: f32[2,16], index: 5, kind: output, shape index: {}]
  %s6 = sld [smem:[#allocation0]]
  $region30: #{cae_conv_encoder_cond.1} parent=0
    _
  %s8 = ssub.s32 1, %s6
  %s9 = scalar_select 0, %s8, %s6
  $region1: #{cae_conv_encoder_cond.1} parent=0
    #allocation2 [shape = 'u8[1024]{0}', space=vmem, size = 0x400, scoped, tag = 'output window, operand 0, single buffered']
    #allocation3 [shape = 's32[1]{0}', space=sflag, size = 0x4, scoped, tag = 'scoped memory for cae_conv_encoder_cond.1']
    %10 = vsyncpa [#allocation3], 0
    // Predicated region
    $region2: #{cae_conv_encoder_cond.1} parent=1 // pred_check
      _
    $region3: #{cae_conv_encoder_cond.1} parent=1 // pred_check_branch
      %12 = sbr.rel (0) target = $region5
    $region4: #{cae_conv_encoder_cond.1} parent=1 // pred_region
      _
    $region5: #{cae_conv_encoder_cond.1} parent=1 // pred_fallthru
      _
    // Predicated region
    $region6: #{cae_conv_encoder_cond.1} parent=1 // pred_check
      _
    $region7: #{cae_conv_encoder_cond.1} parent=1 // pred_check_branch
      %14 = sbr.rel (0) target = $region9
    $region8: #{cae_conv_encoder_cond.1} parent=1 // pred_region
      _
    $region9: #{cae_conv_encoder_cond.1} parent=1 // pred_fallthru
      _
    // Predicated region
    $region10: #{cae_conv_encoder_cond.1} parent=1 // pred_check
      _
    $region11: #{cae_conv_encoder_cond.1} parent=1 // pred_check_branch
      %16 = sbr.rel (0) target = $region13
    $region12: #{cae_conv_encoder_cond.1} parent=1 // pred_region
      _
    $region13: #{cae_conv_encoder_cond.1} parent=1 // pred_fallthru
      _
    // Predicated region
    $region14: #{cae_conv_encoder_cond.1} parent=1 // pred_check
      _
    $region15: #{cae_conv_encoder_cond.1} parent=1 // pred_check_branch
      %18 = sbr.rel (0) target = $region17
    $region16: #{cae_conv_encoder_cond.1} parent=1 // pred_region
      _
    $region17: #{cae_conv_encoder_cond.1} parent=1 // pred_fallthru
      _
    // Predicated region
    $region18: #{cae_conv_encoder_cond.1} parent=1 // pred_check
      _
    $region19: #{cae_conv_encoder_cond.1} parent=1 // pred_check_branch
      %20 = sbr.rel (0) target = $region21
    $region20: #{cae_conv_encoder_cond.1} parent=1 // pred_region
      _
    $region21: #{cae_conv_encoder_cond.1} parent=1 // pred_fallthru
      _
    %v21 = vld [vmem:[%s2] sm:$0xff]
    %v22 = vld [vmem:[%s2 + $0x8] sm:$0xff]
    %v23 = vld [vmem:[%s2 + $0x10] sm:$0xff]
    %v24 = vld [vmem:[%s2 + $0x18] sm:$0xff]
    %v25 = vld [vmem:[%s2 + $0x20] sm:$0xff]
    %v26 = vld [vmem:[%s2 + $0x28] sm:$0xff]
    %v27 = vld [vmem:[%s2 + $0x30] sm:$0x1]
    %v28 = vld [vmem:[%s0] sm:$0x3]
    %v29 = vld [vmem:[%s4] sm:$0x1]
    %v30 = vlaneseq
    %v31 = vshrl.u32 %v30, 7
    %v32 = vsub.s32 0, %v31
    %v33 = vrot.slane %v29, %v32
    %vm34 = vcmask 400384
    %v36 = vsel %vm34, %v28, 0
    %vm38 = vcmask 1040384
    %v40 = vsel %vm38, %v27, 0
    %42 = vmatprep.subr.mxu0 0.0
    %43 = vmatpush1.msra.mxu0 %v21
    %44 = vmatprep.subr.mxu0 0.0
    %45 = vmatpush1.msra.mxu0 %v22
    %46 = vmatprep.subr.mxu0 0.0
    %47 = vmatpush1.msra.mxu0 %v23
    %48 = vmatprep.subr.mxu0 0.0
    %49 = vmatpush1.msra.mxu0 %v24
    %50 = vmatprep.subr.mxu0 0.0
    %51 = vmatpush1.msra.mxu0 %v25
    %52 = vmatprep.subr.mxu0 0.0
    %53 = vmatpush1.msra.mxu0 %v26
    %54 = vmatprep.subr.mxu0 0.0
    %55 = vmatpush1.msra.mxu0 %v40
    %56 = vmatprep.subr.mxu0 0.0
    %57 = vmatpush1.msra.mxu0 0.0
    %58 = vmatprep.subr.mxu0 0.0
    %59 = vmatpush1.msra.mxu0 0.0
    %60 = vmatprep.subr.mxu0 0.0
    %61 = vmatpush1.msra.mxu0 0.0
    %62 = vmatprep.subr.mxu0 0.0
    %63 = vmatpush1.msra.mxu0 0.0
    %64 = vmatprep.subr.mxu0 0.0
    %65 = vmatpush1.msra.mxu0 0.0
    %66 = vmatprep.subr.mxu0 0.0
    %67 = vmatpush1.msra.mxu0 0.0
    %68 = vmatprep.subr.mxu0 0.0
    %69 = vmatpush1.msra.mxu0 0.0
    %70 = vmatprep.subr.mxu0 0.0
    %71 = vmatpush1.msra.mxu0 0.0
    %72 = vmatprep.subr.mxu0 0.0
    %73 = vmatpush1.msra.mxu0 0.0
    %74 = vmatprep.subr.mxu0 0.0
    %75 = vmatpush1.msra.mxu0 0.0
    %76 = vmatprep.subr.mxu0 0.0
    %77 = vmatpush1.msra.mxu0 0.0
    %78 = vmatprep.subr.mxu0 0.0
    %79 = vmatpush1.msra.mxu0 0.0
    %80 = vmatprep.subr.mxu0 0.0
    %81 = vmatpush1.msra.mxu0 0.0
    %82 = vmatprep.subr.mxu0 0.0
    %83 = vmatpush1.msra.mxu0 0.0
    %84 = vmatprep.subr.mxu0 0.0
    %85 = vmatpush1.msra.mxu0 0.0
    %86 = vmatprep.subr.mxu0 0.0
    %87 = vmatpush1.msra.mxu0 0.0
    %88 = vmatprep.subr.mxu0 0.0
    %89 = vmatpush1.msra.mxu0 0.0
    %90 = vmatprep.subr.mxu0 0.0
    %91 = vmatpush1.msra.mxu0 0.0
    %92 = vmatprep.subr.mxu0 0.0
    %93 = vmatpush1.msra.mxu0 0.0
    %94 = vmatprep.subr.mxu0 0.0
    %95 = vmatpush1.msra.mxu0 0.0
    %96 = vmatprep.subr.mxu0 0.0
    %97 = vmatpush1.msra.mxu0 0.0
    %98 = vmatprep.subr.mxu0 0.0
    %99 = vmatpush1.msra.mxu0 0.0
    %100 = vmatprep.subr.mxu0 0.0
    %101 = vmatpush1.msra.mxu0 0.0
    %102 = vmatprep.subr.mxu0 0.0
    %103 = vmatpush1.msra.mxu0 0.0
    %104 = vmatprep.subr.mxu0 0.0
    %105 = vmatpush1.msra.mxu0 0.0
    %106 = vmatprep.mubr.f32.mxu0 0.0
    %107 = vmatmul.mubr.f32.gmra.mrb[0].mxu0 %v36
    %v108 = vpop.f32.mrb[0].mxu0
    %v109 = vadd.f32 %v33, %v108
    %v110 = vpop.f32.mrb[0].mxu0
    %111 = vdwg.mxu0
    %v112 = vmax.f32 %v109, 0.0
    %v113 = vld [vmem:[%s3] sm:$0xff]
    %v114 = vld [vmem:[%s3 + $0x8] sm:$0xff]
    %v115 = vld [vmem:[%s3 + $0x10] sm:$0xff]
    %v116 = vld [vmem:[%s3 + $0x18] sm:$0xff]
    %v117 = vld [vmem:[%s3 + $0x20] sm:$0xff]
    %v118 = vld [vmem:[%s3 + $0x28] sm:$0xff]
    %v119 = vld [vmem:[%s3 + $0x30] sm:$0xff]
    %v120 = vld [vmem:[%s3 + $0x38] sm:$0xff]
    %v121 = vld [vmem:[%s3 + $0x40] sm:$0xff]
    %v122 = vld [vmem:[%s1] sm:$0x1]
    %123 = vxpose.xlu0.b32.start [1/16] %v122, 128
    %124 = vxpose.xlu0.b32.cont [2/16] 0.0, 128
    %125 = vxpose.xlu0.b32.cont [3/16] 0.0, 128
    %126 = vxpose.xlu0.b32.cont [4/16] 0.0, 128
    %127 = vxpose.xlu0.b32.cont [5/16] 0.0, 128
    %128 = vxpose.xlu0.b32.cont [6/16] 0.0, 128
    %129 = vxpose.xlu0.b32.cont [7/16] 0.0, 128
    %130 = vxpose.xlu0.b32.cont [8/16] 0.0, 128
    %131 = vxpose.xlu0.b32.cont [9/16] 0.0, 128
    %132 = vxpose.xlu0.b32.cont [10/16] 0.0, 128
    %133 = vxpose.xlu0.b32.cont [11/16] 0.0, 128
    %134 = vxpose.xlu0.b32.cont [12/16] 0.0, 128
    %135 = vxpose.xlu0.b32.cont [13/16] 0.0, 128
    %136 = vxpose.xlu0.b32.cont [14/16] 0.0, 128
    %137 = vxpose.xlu0.b32.cont [15/16] 0.0, 128
    %138 = vxpose.xlu0.b32.end [16/16] 0.0, 128
    %v139 = vpop.trf.xlu0
    %v140 = vpop.trf.xlu0
    %v141 = vpop.trf.xlu0
    %v142 = vpop.trf.xlu0
    %v143 = vpop.trf.xlu0
    %v144 = vpop.trf.xlu0
    %v145 = vpop.trf.xlu0
    %v146 = vpop.trf.xlu0
    %v147 = vpop.trf.xlu0
    %v148 = vpop.trf.xlu0
    %v149 = vpop.trf.xlu0
    %v150 = vpop.trf.xlu0
    %v151 = vpop.trf.xlu0
    %v152 = vpop.trf.xlu0
    %v153 = vpop.trf.xlu0
    %v154 = vpop.trf.xlu0
    %v155 = vld [vmem:[%s4 + $0x1] sm:$0x1]
    %157 = vset.pattern.permute.xlu0 0
    %158 = vperm.xlu0 %157, %v139
    %v159 = vpop.permute.xlu0 %158
    %v161 = vlaneseq
    %v162 = vshrl.u32 %v161, 7
    %v163 = vsub.s32 0, %v162
    %v164 = vrot.slane %v155, %v163
    %v165 = vmul.f32 %v159, %v164
    %vm166 = vcmask 588800
    %v168 = vsel %vm166, %v112, 0
    %170 = vmatprep.subr.mxu0 0.0
    %171 = vmatpush1.msra.mxu0 %v113
    %172 = vmatprep.subr.mxu0 0.0
    %173 = vmatpush1.msra.mxu0 %v114
    %174 = vmatprep.subr.mxu0 0.0
    %175 = vmatpush1.msra.mxu0 %v115
    %176 = vmatprep.subr.mxu0 0.0
    %177 = vmatpush1.msra.mxu0 %v116
    %178 = vmatprep.subr.mxu0 0.0
    %179 = vmatpush1.msra.mxu0 %v117
    %180 = vmatprep.subr.mxu0 0.0
    %181 = vmatpush1.msra.mxu0 %v118
    %182 = vmatprep.subr.mxu0 0.0
    %183 = vmatpush1.msra.mxu0 %v119
    %184 = vmatprep.subr.mxu0 0.0
    %185 = vmatpush1.msra.mxu0 %v120
    %186 = vmatprep.subr.mxu0 0.0
    %187 = vmatpush1.msra.mxu0 %v121
    %188 = vmatprep.subr.mxu0 0.0
    %189 = vmatpush1.msra.mxu0 0.0
    %190 = vmatprep.subr.mxu0 0.0
    %191 = vmatpush1.msra.mxu0 0.0
    %192 = vmatprep.subr.mxu0 0.0
    %193 = vmatpush1.msra.mxu0 0.0
    %194 = vmatprep.subr.mxu0 0.0
    %195 = vmatpush1.msra.mxu0 0.0
    %196 = vmatprep.subr.mxu0 0.0
    %197 = vmatpush1.msra.mxu0 0.0
    %198 = vmatprep.subr.mxu0 0.0
    %199 = vmatpush1.msra.mxu0 0.0
    %200 = vmatprep.subr.mxu0 0.0
    %201 = vmatpush1.msra.mxu0 0.0
    %202 = vmatprep.subr.mxu0 0.0
    %203 = vmatpush1.msra.mxu0 0.0
    %204 = vmatprep.subr.mxu0 0.0
    %205 = vmatpush1.msra.mxu0 0.0
    %206 = vmatprep.subr.mxu0 0.0
    %207 = vmatpush1.msra.mxu0 0.0
    %208 = vmatprep.subr.mxu0 0.0
    %209 = vmatpush1.msra.mxu0 0.0
    %210 = vmatprep.subr.mxu0 0.0
    %211 = vmatpush1.msra.mxu0 0.0
    %212 = vmatprep.subr.mxu0 0.0
    %213 = vmatpush1.msra.mxu0 0.0
    %214 = vmatprep.subr.mxu0 0.0
    %215 = vmatpush1.msra.mxu0 0.0
    %216 = vmatprep.subr.mxu0 0.0
    %217 = vmatpush1.msra.mxu0 0.0
    %218 = vmatprep.subr.mxu0 0.0
    %219 = vmatpush1.msra.mxu0 0.0
    %220 = vmatprep.subr.mxu0 0.0
    %221 = vmatpush1.msra.mxu0 0.0
    %222 = vmatprep.subr.mxu0 0.0
    %223 = vmatpush1.msra.mxu0 0.0
    %224 = vmatprep.subr.mxu0 0.0
    %225 = vmatpush1.msra.mxu0 0.0
    %226 = vmatprep.subr.mxu0 0.0
    %227 = vmatpush1.msra.mxu0 0.0
    %228 = vmatprep.subr.mxu0 0.0
    %229 = vmatpush1.msra.mxu0 0.0
    %230 = vmatprep.subr.mxu0 0.0
    %231 = vmatpush1.msra.mxu0 0.0
    %232 = vmatprep.subr.mxu0 0.0
    %233 = vmatpush1.msra.mxu0 0.0
    %234 = vmatprep.mubr.f32.mxu0 0.0
    %235 = vmatmul.mubr.f32.gmra.mrb[0].mxu0 %v168
    %v236 = vpop.f32.mrb[0].mxu0
    %v237 = vadd.f32 %v165, %v236
    %v238 = vpop.f32.mrb[0].mxu0
    %239 = vdwg.mxu0
    %v240 = vld [vmem:[%s4 + $0x2] sm:$0x1]
    %v241 = vlaneseq
    %v242 = vshrl.u32 %v241, 7
    %v243 = vsub.s32 0, %v242
    %v244 = vrot.slane %v240, %v243
    %v245 = vadd.f32 %v237, %v244
    %v246 = vmax.f32 %v245, 0.0
    %vm247 = vcmask 123904
    %248 = vst.msk [vmem:[#allocation2] sm:$0x3] %vm247, %v246
    // Predicated region
    $region22: #{cae_conv_encoder_cond.1} parent=1 // pred_check
      _
    $region23: #{cae_conv_encoder_cond.1} parent=1 // pred_check_branch
      %250 = sbr.rel (0) target = $region25
    $region24: #{cae_conv_encoder_cond.1} parent=1 // pred_region
      %s252 = ssub.s32 32, 32
      %253 = vsyncadd [#allocation3], %s252
      %s255 = sshll.u32 [#allocation2], 4
      %s256 = int_to_ptr.vmem [resolvable:$true] %s255
      %258 = dma.vmem_to_hbm [thread:$0]  %s256, 32, %s5, [#allocation3]
    $region25: #{cae_conv_encoder_cond.1} parent=1 // pred_fallthru
      _
    // Predicated region
    $region26: #{cae_conv_encoder_cond.1} parent=1 // pred_check
      _
    $region27: #{cae_conv_encoder_cond.1} parent=1 // pred_check_branch
      %260 = sbr.rel (0) target = $region29
    $region28: #{cae_conv_encoder_cond.1} parent=1 // pred_region
      %261 = dma.done [#allocation3], 32
    $region29: #{cae_conv_encoder_cond.1} parent=1 // pred_fallthru
      _
    %262 = vsyncpa [#allocation3], 1

</llo_original>
